<compile_context>
chip_gen: v6e
topology: v6e:2x2x1
jax: 0.10.0
libtpu: 0.0.40
codegen_flags: <defaults>
</compile_context>

<pallas_src>
import jax
import jax.numpy as jnp
from jax.experimental import pallas as pl
from jax.experimental.pallas import tpu as pltpu

_SMALL_BYTES = 2 * 1024 * 1024          # below this per operand: one block is fine
_MAX_LANES = 4096
_MIN_LANES = 128


def _weighted_sum_kernel(w_ref, a_ref, b_ref, o_ref):
    # w_ref: (2,) post-softmax weights, scalar-prefetched into SMEM (f32).
    # a_ref / b_ref / o_ref: (block_rows, lanes) VMEM tiles.  Pure FMA body.
    w0 = w_ref[0]
    w1 = w_ref[1]
    fused = w0 * a_ref[...].astype(jnp.float32) + w1 * b_ref[...].astype(jnp.float32)
    o_ref[...] = fused.astype(o_ref.dtype)


def _sublane_multiple(dtype):
    # (sub, 128) tiling granularity: 8 for 4-byte, 16 for 2-byte, 32 for 1-byte.
    itemsize = jnp.dtype(dtype).itemsize
    return max(8, 32 // max(itemsize, 1))


def _pick_lanes(total):
    """Widest lane count in [128, 4096] that divides `total` exactly.

    Multiples of 128 (fully unmasked stores) are preferred; otherwise the
    widest exact divisor is used (full-extent last dim, ~>=98% lane density).
    Returns None when no divisor >= 128 exists (tiny / pathological sizes).
    """
    best = None
    for lanes in range(_MAX_LANES, _MIN_LANES - 1, -1):
        if total % lanes == 0:
            if lanes % 128 == 0:
                return lanes
            if best is None:
                best = lanes
    return best


def _device_tuning():
    """(per-operand block bytes, vmem limit) tuned per TPU generation."""
    try:
        kind = jax.devices()[0].device_kind.lower()
    except Exception:  # pragma: no cover - defensive; fall back to safe defaults
        kind = ""
    if "v7" in kind:
        # 3.2 TB/s HBM: bigger blocks re-amortize the ~0.35us/step overhead.
        # 2 bufs x (2 in + 1 out) x 4 MiB <= ~32 MiB live, under the 48 MiB cap
        # and well under 64 MiB physical VMEM.
        return 4 * 1024 * 1024, 48 * 1024 * 1024
    # v5e / v6e: 2 MiB blocks already put per-step overhead <10%; keep the
    # explicit 32 MiB limit (12-16 MiB live + Mosaic scratch is tight vs the
    # 16 MiB default on v5e).
    return 2 * 1024 * 1024, 32 * 1024 * 1024


def _block_rows_and_grid(rows, lanes, in_itemsize, sub, block_bytes):
    """Pick block_rows / grid: big blocks, but >= 4 even steps once > 2 MiB."""
    bytes_per_operand = rows * lanes * in_itemsize
    if rows <= sub or bytes_per_operand <= _SMALL_BYTES:
        return rows, 1                              # tiny: one full-extent block
    # >= 4 (even) grid steps: DMA/compute/writeback overlap and both v7x
    # TensorCores ("parallel" axis) get >= 2 blocks each.
    n_steps = max(4, pl.cdiv(bytes_per_operand, block_bytes))
    if n_steps % 2:
        n_steps += 1
    block_rows = pl.cdiv(rows, n_steps)
    block_rows = max(sub, pl.cdiv(block_rows, sub) * sub)
    grid = pl.cdiv(rows, block_rows)
    return block_rows, grid


def _jnp_blend(a, b, w, out_dtype):
    return (w[0] * a.astype(jnp.float32) + w[1] * b.astype(jnp.float32)).astype(out_dtype)


def weighted_sum(top_down, bottom_up, weights):
    """WeightedSum.forward: softmax(w)[0] * top_down + softmax(w)[1] * bottom_up."""
    assert top_down.shape == bottom_up.shape, "WeightedSum inputs must match"
    orig_shape = top_down.shape
    in_dtype = top_down.dtype

    # 2-way softmax hoisted out of the kernel (scalar prologue).
    w = jax.nn.softmax(weights.astype(jnp.float32))
    # PyTorch type promotion: f32 weights x bf16 features -> f32 output.
    out_dtype = jnp.promote_types(in_dtype, jnp.float32)

    total = int(top_down.size)
    lanes = _pick_lanes(total)
    if lanes is None:
        # No divisor >= 128 (tiny / pathological element count).  XLA's fused
        # elementwise is already at the HBM roofline here and avoids the extra
        # pad/slice/concat HBM passes a forced kernel path would need.
        return _jnp_blend(top_down, bottom_up, w, out_dtype)

    rows = total // lanes
    a2d = top_down.reshape(rows, lanes)
    b2d = bottom_up.reshape(rows, lanes)

    in_itemsize = jnp.dtype(in_dtype).itemsize
    out_itemsize = jnp.dtype(out_dtype).itemsize
    sub = max(_sublane_multiple(in_dtype), _sublane_multiple(out_dtype))
    block_bytes, vmem_limit = _device_tuning()
    block_rows, n_blocks = _block_rows_and_grid(rows, lanes, in_itemsize, sub, block_bytes)

    out2d = pl.pallas_call(
        _weighted_sum_kernel,
        out_shape=jax.ShapeDtypeStruct((rows, lanes), out_dtype),
        grid_spec=pltpu.PrefetchScalarGridSpec(
            num_scalar_prefetch=1,                  # (2,) weights land in SMEM
            grid=(n_blocks,),
            in_specs=[
                pl.BlockSpec((block_rows, lanes), lambda i, w_ref: (i, 0)),  # top_down
                pl.BlockSpec((block_rows, lanes), lambda i, w_ref: (i, 0)),  # bottom_up
            ],
            out_specs=pl.BlockSpec((block_rows, lanes), lambda i, w_ref: (i, 0)),
        ),
        compiler_params=pltpu.CompilerParams(
            dimension_semantics=("parallel",),      # v7x: rows split across 2 TCs
            vmem_limit_bytes=vmem_limit,
        ),
        cost_estimate=pl.CostEstimate(
            flops=3 * total,                        # 2 mul + 1 add per element
            transcendentals=0,
            bytes_accessed=total * (2 * in_itemsize + out_itemsize),
        ),
    )(w, a2d, b2d)

    return out2d.reshape(orig_shape)


if __name__ == "__main__":
    # Deterministic parameter init: nn.Parameter(torch.ones(2))
    weights = jnp.ones((2,), dtype=jnp.float32)
    key = jax.random.PRNGKey(0)

    def run_check(k, shape, dtype, atol):
        k1, k2 = jax.random.split(k)
        a = jax.random.normal(k1, shape, dtype=jnp.float32).astype(dtype)
        b = jax.random.normal(k2, shape, dtype=jnp.float32).astype(dtype)
        out = jax.block_until_ready(weighted_sum(a, b, weights))
        sm = jax.nn.softmax(weights.astype(jnp.float32))
        ref = sm[0] * a.astype(jnp.float32) + sm[1] * b.astype(jnp.float32)
        exp_dtype = jnp.promote_types(dtype, jnp.float32)
        assert out.shape == shape, f"shape mismatch {out.shape} vs {shape}"
        assert out.dtype == exp_dtype, f"dtype mismatch {out.dtype} vs {exp_dtype}"
        assert jnp.allclose(out.astype(jnp.float32), ref, atol=atol), (
            f"value mismatch for shape={shape} dtype={dtype}")

    k0, k1, k2, k3, k4, k5 = jax.random.split(key, 6)
    # Small NCHW case matching the module demo (single full-extent block).
    run_check(k0, (2, 4, 16, 16), jnp.float32, 1e-6)
    # Odd spatial size -> exact-divisor lanes (2904), kernel path, no pad/trim.
    run_check(k1, (2, 8, 33, 33), jnp.float32, 1e-6)
    # 4 MiB / operand -> >=4-step pipelined "parallel" grid.
    run_check(k2, (8, 32, 64, 64), jnp.float32, 1e-6)
    # 2.25 MiB / operand -> tiled grid with a partial final block.
    run_check(k3, (6, 24, 64, 64), jnp.float32, 1e-6)
    # bf16 inputs -> f32 output (PyTorch promotion), blend in f32.
    run_check(k4, (2, 4, 16, 16), jnp.bfloat16, 1e-5)
    # Pathological tiny size (no divisor >= 128) -> roofline jnp fallback.
    run_check(k5, (1, 1, 3, 7), jnp.float32, 1e-6)

    print("KERNEL_OK")
</pallas_src>

<mosaic_0001>
module attributes {stable_mosaic.version = 11 : i64} {
  func.func @_weighted_sum_kernel(%arg0: i32, %arg1: memref<2xf32, #tpu.memory_space<smem>>, %arg2: memref<1x2048xf32, #tpu.memory_space<vmem>>, %arg3: memref<1x2048xf32, #tpu.memory_space<vmem>>, %arg4: memref<1x2048xf32, #tpu.memory_space<vmem>>) attributes {dimension_semantics = [#tpu.dimension_semantics<parallel>], iteration_bounds = array<i64: 1>, scalar_prefetch = 1 : i64, scratch_operands = 0 : i64, tpu.core_type = #tpu.core_type<tc>, window_params = [{transform_indices = @transform_0, window_bounds = array<i64: 1, 2048>}, {transform_indices = @transform_1, window_bounds = array<i64: 1, 2048>}, {transform_indices = @transform_2, window_bounds = array<i64: 1, 2048>}]} {
    %c0 = arith.constant 0 : index
    %0 = memref.load %arg1[%c0] : memref<2xf32, #tpu.memory_space<smem>>
    %c1 = arith.constant 1 : index
    %1 = memref.load %arg1[%c1] : memref<2xf32, #tpu.memory_space<smem>>
    %c0_0 = arith.constant 0 : index
    %c0_1 = arith.constant 0 : index
    %2 = vector.load %arg2[%c0_0, %c0_1] : memref<1x2048xf32, #tpu.memory_space<vmem>>, vector<1x2048xf32>
    %3 = vector.broadcast %0 : f32 to vector<1x2048xf32>
    %4 = arith.mulf %3, %2 : vector<1x2048xf32>
    %c0_2 = arith.constant 0 : index
    %c0_3 = arith.constant 0 : index
    %5 = vector.load %arg3[%c0_2, %c0_3] : memref<1x2048xf32, #tpu.memory_space<vmem>>, vector<1x2048xf32>
    %6 = vector.broadcast %1 : f32 to vector<1x2048xf32>
    %7 = arith.mulf %6, %5 : vector<1x2048xf32>
    %8 = arith.addf %4, %7 : vector<1x2048xf32>
    %c0_4 = arith.constant 0 : index
    %c0_5 = arith.constant 0 : index
    %9 = vector.load %arg4[%c0_4, %c0_5] : memref<1x2048xf32, #tpu.memory_space<vmem>>, vector<1x2048xf32>
    tpu.vector_store %arg4[%c0_4, %c0_5], %8 {strides = array<i32>} : memref<1x2048xf32, #tpu.memory_space<vmem>>, vector<1x2048xf32>,
    return
  }
  func.func @transform_0(%arg0: i32, %arg1: memref<2xf32, #tpu.memory_space<smem>>) -> (i32, i32) {
    %c0_i32 = arith.constant 0 : i32
    %c0_i32_0 = arith.constant 0 : i32
    return %arg0, %c0_i32 : i32, i32
  }
  func.func @transform_1(%arg0: i32, %arg1: memref<2xf32, #tpu.memory_space<smem>>) -> (i32, i32) {
    %c0_i32 = arith.constant 0 : i32
    %c0_i32_0 = arith.constant 0 : i32
    return %arg0, %c0_i32 : i32, i32
  }
  func.func @transform_2(%arg0: i32, %arg1: memref<2xf32, #tpu.memory_space<smem>>) -> (i32, i32) {
    %c0_i32 = arith.constant 0 : i32
    %c0_i32_0 = arith.constant 0 : i32
    return %arg0, %c0_i32 : i32, i32
  }
}

</mosaic_0001>

<llo_original>
// kernel: tpu_custom_call.1
$region0: #{tpu_custom_call.1}
  #allocation0 [shape = 'u32[]', space=smem, size = 0x4, offset = 0x4, fixed_abs, tag = 'smem constant byte address 0x4 - core index']
  #allocation1 [shape = 'u32[144,128]{1,0:T(1,128)}', space=vmem, size = 0x12000, scoped, tag = 'internal scratch']
  #allocation2 [shape = 's32[1]{0}', space=sflag, size = 0x4, scoped, tag = 'scoped memory for tpu_custom_call.1']
  #allocation3 [shape = 'u8[512]{0}', space=smem, size = 0x200, scoped, tag = 'prefetched SMEM operand 0']
  %s0 = inlined_call_operand.hbm [shape: f32[2], index: 0, kind: input, shape index: {}]
  %s1 = inlined_call_operand.hbm [shape: f32[1,2048], index: 1, kind: input, shape index: {}]
  %s2 = inlined_call_operand.hbm [shape: f32[1,2048], index: 2, kind: input, shape index: {}]
  %s3 = inlined_call_operand.hbm [shape: f32[1,2048], index: 3, kind: output, shape index: {}]
  %s4 = sld [smem:[#allocation0]]
  $region26: #{tpu_custom_call.1} parent=0
    _
  %s6 = ssub.s32 1, %s4
  %s7 = scalar_select 0, %s6, %s4
  %9 = dma.hbm_to_smem %s0, 16, [#allocation3], [#allocation2]
  %10 = dma.done [#allocation2], 16
  %11 = sfence
  $region1: #{tpu_custom_call.1} parent=0
    #allocation4 [shape = 'u8[8192]{0}', space=vmem, size = 0x2000, scoped, tag = 'input window, operand 1, single buffered']
    #allocation5 [shape = 's32[1]{0}', space=sflag, size = 0x4, scoped, tag = 'scoped memory for tpu_custom_call.1']
    #allocation6 [shape = 's32[1]{0}', space=sflag, size = 0x4, scoped, tag = 'scoped memory for tpu_custom_call.1']
    #allocation7 [shape = 'u8[8192]{0}', space=vmem, size = 0x2000, scoped, tag = 'input window, operand 2, single buffered']
    #allocation8 [shape = 's32[1]{0}', space=sflag, size = 0x4, scoped, tag = 'scoped memory for tpu_custom_call.1']
    #allocation9 [shape = 'u8[8192]{0}', space=vmem, size = 0x2000, scoped, tag = 'output window, operand 0, single buffered']
    %12 = vsyncpa [#allocation5], 0
    %13 = vsyncpa [#allocation8], 0
    %14 = vsyncpa [#allocation6], 0
    // Predicated region
    $region2: #{tpu_custom_call.1} parent=1 // pred_check
      _
    $region3: #{tpu_custom_call.1} parent=1 // pred_check_branch
      %16 = sbr.rel (0) target = $region5
    $region4: #{tpu_custom_call.1} parent=1 // pred_region
      %s18 = ssub.s32 256, 256
      %19 = vsyncadd [#allocation5], %s18
      %s21 = sshll.u32 [#allocation4], 4
      %s22 = int_to_ptr.vmem [resolvable:$true] %s21
      %24 = dma.hbm_to_vmem [thread:$0]  %s1, 256, %s22, [#allocation5]
    $region5: #{tpu_custom_call.1} parent=1 // pred_fallthru
      _
    // Predicated region
    $region6: #{tpu_custom_call.1} parent=1 // pred_check
      _
    $region7: #{tpu_custom_call.1} parent=1 // pred_check_branch
      %26 = sbr.rel (0) target = $region9
    $region8: #{tpu_custom_call.1} parent=1 // pred_region
      %s28 = ssub.s32 256, 256
      %29 = vsyncadd [#allocation8], %s28
      %s31 = sshll.u32 [#allocation7], 4
      %s32 = int_to_ptr.vmem [resolvable:$true] %s31
      %34 = dma.hbm_to_vmem [thread:$0]  %s2, 256, %s32, [#allocation8]
    $region9: #{tpu_custom_call.1} parent=1 // pred_fallthru
      _
    // Predicated region
    $region10: #{tpu_custom_call.1} parent=1 // pred_check
      _
    $region11: #{tpu_custom_call.1} parent=1 // pred_check_branch
      %36 = sbr.rel (0) target = $region13
    $region12: #{tpu_custom_call.1} parent=1 // pred_region
      %37 = dma.done [#allocation5], 256
    $region13: #{tpu_custom_call.1} parent=1 // pred_fallthru
      _
    // Predicated region
    $region14: #{tpu_custom_call.1} parent=1 // pred_check
      _
    $region15: #{tpu_custom_call.1} parent=1 // pred_check_branch
      %39 = sbr.rel (0) target = $region17
    $region16: #{tpu_custom_call.1} parent=1 // pred_region
      %40 = dma.done [#allocation8], 256
    $region17: #{tpu_custom_call.1} parent=1 // pred_fallthru
      _
    %s41 = sld [smem:[#allocation3]]
    %s42 = sld [smem:[#allocation3 + $0x1]]
    %v43 = vld [vmem:[#allocation4] sm:$0xff]
    %v44 = vld [vmem:[#allocation4 + $0x8] sm:$0xff]
    %v45 = vstv %s41
    %v46 = vmul.f32 %v45, %v43
    %v47 = vmul.f32 %v45, %v44
    %v48 = vld [vmem:[#allocation7] sm:$0xff]
    %v49 = vld [vmem:[#allocation7 + $0x8] sm:$0xff]
    %v50 = vstv %s42
    %v51 = vmul.f32 %v50, %v48
    %v52 = vmul.f32 %v50, %v49
    %v53 = vadd.f32 %v46, %v51
    %v54 = vadd.f32 %v47, %v52
    %55 = vst [vmem:[#allocation9] sm:$0xff] %v53
    %56 = vst [vmem:[#allocation9 + $0x8] sm:$0xff] %v54
    // Predicated region
    $region18: #{tpu_custom_call.1} parent=1 // pred_check
      _
    $region19: #{tpu_custom_call.1} parent=1 // pred_check_branch
      %58 = sbr.rel (0) target = $region21
    $region20: #{tpu_custom_call.1} parent=1 // pred_region
      %s60 = ssub.s32 256, 256
      %61 = vsyncadd [#allocation6], %s60
      %s63 = sshll.u32 [#allocation9], 4
      %s64 = int_to_ptr.vmem [resolvable:$true] %s63
      %66 = dma.vmem_to_hbm [thread:$0]  %s64, 256, %s3, [#allocation6]
    $region21: #{tpu_custom_call.1} parent=1 // pred_fallthru
      _
    // Predicated region
    $region22: #{tpu_custom_call.1} parent=1 // pred_check
      _
    $region23: #{tpu_custom_call.1} parent=1 // pred_check_branch
      %68 = sbr.rel (0) target = $region25
    $region24: #{tpu_custom_call.1} parent=1 // pred_region
      %69 = dma.done [#allocation6], 256
    $region25: #{tpu_custom_call.1} parent=1 // pred_fallthru
      _
    %70 = vsyncpa [#allocation5], 1
    %71 = vsyncpa [#allocation8], 1
    %72 = vsyncpa [#allocation6], 1

</llo_original>
